<compile_context>
chip_gen: v5e
topology: v5e:2x2
jax: 0.10.0
libtpu: 0.0.40
codegen_flags: <defaults>
</compile_context>

<pallas_src>
import functools

import jax
import jax.numpy as jnp
from jax.experimental import pallas as pl
from jax.experimental.pallas import tpu as pltpu

_BIG = 1e30  # "infinitely far" padding sentinel (finite, f32-safe)


def _round_up(x, m):
    return (x + m - 1) // m * m


def _cd_loss_kernel(p_ref, g_ref, o_ref, ex_ref, ey_ref, *,
                    n_points, m_points, tn, tm):
    n = pl.program_id(1)
    m = pl.program_id(2)
    n_last = pl.num_programs(1) - 1
    m_last = pl.num_programs(2) - 1

    # e = p.g - 0.5||p||^2 - 0.5||g||^2 = -0.5 * squared distance, via a single
    # MXU contraction over the augmented coordinate (sublane) axis.
    e = jax.lax.dot_general(
        p_ref[0], g_ref[0],                              # (D+2, TN), (D+2, TM)
        dimension_numbers=(((0,), (0,)), ((), ())),
        preferred_element_type=jnp.float32)               # (TN, TM)

    row_max = jnp.max(e, axis=1, keepdims=True)            # (TN, 1): max_m e -> d_x
    col_max = jnp.max(e, axis=0, keepdims=True)            # (1, TM): max_n e -> d_y

    # d_x accumulator: running max over the M (innermost) grid axis.
    @pl.when(m == 0)
    def _():
        ex_ref[...] = jnp.full_like(ex_ref, -jnp.inf)

    ex_ref[...] = jnp.maximum(ex_ref[...], row_max)

    # d_y accumulator: running max over the N grid axis, one slot per M tile.
    @pl.when(n == 0)
    def _():
        ey_ref[m] = jnp.full(col_max.shape, -jnp.inf, jnp.float32)

    ey_ref[m] = jnp.maximum(ey_ref[m], col_max)

    # Per-batch output slab init (output block is resident across n, m).
    @pl.when(jnp.logical_and(n == 0, m == 0))
    def _():
        o_ref[...] = jnp.zeros_like(o_ref)

    # Finalize d_x for this N tile once all M tiles have been seen.
    @pl.when(m == m_last)
    def _():
        d_x = jnp.maximum(-2.0 * ex_ref[...], 0.0)          # (TN, 1)
        if n_points % tn != 0:                              # static: N has tail padding
            rows = n * tn + jax.lax.broadcasted_iota(jnp.int32, (tn, 1), 0)
            d_x = jnp.where(rows < n_points, d_x, 0.0)
        o_ref[...] += jnp.sum(d_x) / n_points

    # Finalize d_y for this M tile once all N tiles have been seen.
    @pl.when(n == n_last)
    def _():
        d_y = jnp.maximum(-2.0 * ey_ref[m], 0.0)            # (1, TM)
        if m_points % tm != 0:                              # static: M has tail padding
            cols = m * tm + jax.lax.broadcasted_iota(jnp.int32, (1, tm), 1)
            d_y = jnp.where(cols < m_points, d_y, 0.0)
        o_ref[...] += jnp.sum(d_y) / m_points


def _augment(points, pad_to, kind):
    """(B, P, D) -> (B, D+2, pad_to) coordinate-major augmented layout (f32)."""
    B, P, D = points.shape
    xt = jnp.swapaxes(points.astype(jnp.float32), 1, 2)      # (B, D, P)
    n2 = jnp.sum(xt * xt, axis=1, keepdims=True)             # (B, 1, P)
    if kind == "pred":
        aug = jnp.concatenate([xt, n2, jnp.ones_like(n2)], axis=1)
        pad_row, pad_val = D, _BIG       # huge norm => never a nearest neighbour
    else:
        aug = jnp.concatenate([xt, jnp.full_like(n2, -0.5), -0.5 * n2], axis=1)
        pad_row, pad_val = D + 1, -_BIG
    if pad_to > P:
        pad = jnp.zeros((B, D + 2, pad_to - P), jnp.float32)
        pad = pad.at[:, pad_row, :].set(pad_val)
        aug = jnp.concatenate([aug, pad], axis=2)
    return aug


def cd_loss(prediction: jax.Array, ground_truth: jax.Array,
            *, tile_n: int = 512, tile_m: int = 512) -> jax.Array:
    """Pallas chamfer-distance loss. Returns shape (B,) float32."""
    B, N, D = prediction.shape
    B2, M, D2 = ground_truth.shape
    assert B == B2 and D == D2
    assert tile_n % 128 == 0 and tile_m % 128 == 0

    d_aug = D + 2
    tn = min(tile_n, _round_up(N, 128))
    tm = min(tile_m, _round_up(M, 128))
    n_pad = _round_up(N, tn)
    m_pad = _round_up(M, tm)
    n_tiles = n_pad // tn
    m_tiles = m_pad // tm

    p_aug = _augment(prediction, n_pad, "pred")     # (B, D+2, N_pad)
    g_aug = _augment(ground_truth, m_pad, "gt")     # (B, D+2, M_pad)

    kernel = functools.partial(_cd_loss_kernel,
                               n_points=N, m_points=M, tn=tn, tm=tm)

    cost = pl.CostEstimate(
        flops=2 * B * n_pad * m_pad * d_aug,
        transcendentals=0,
        bytes_accessed=4 * B * (d_aug * n_pad * m_tiles
                                + d_aug * m_pad * n_tiles + 128),
    )

    out = pl.pallas_call(
        kernel,
        out_shape=jax.ShapeDtypeStruct((B, 1, 128), jnp.float32),
        grid_spec=pltpu.PrefetchScalarGridSpec(
            num_scalar_prefetch=0,
            grid=(B, n_tiles, m_tiles),
            in_specs=[
                pl.BlockSpec((1, d_aug, tn), lambda b, n, m: (b, 0, n)),
                pl.BlockSpec((1, d_aug, tm), lambda b, n, m: (b, 0, m)),
            ],
            out_specs=pl.BlockSpec((1, 1, 128), lambda b, n, m: (b, 0, 0)),
            scratch_shapes=[
                pltpu.VMEM((tn, 1), jnp.float32),           # ex: running max over M
                pltpu.VMEM((m_tiles, 1, tm), jnp.float32),  # ey: running max over N
            ],
        ),
        compiler_params=pltpu.CompilerParams(
            # The N and M tile axes accumulate into shared scratch / the same
            # output block (d_y is a min across N), so they must stay
            # "arbitrary"; only the batch axis is parallel.
            dimension_semantics=("parallel", "arbitrary", "arbitrary"),
        ),
        cost_estimate=cost,
    )(p_aug, g_aug)
    return out[:, 0, 0]


def cd_loss_ref(prediction: jax.Array, ground_truth: jax.Array) -> jax.Array:
    """Pure-JAX reference mirroring the PyTorch module."""
    p = prediction.astype(jnp.float32)
    g = ground_truth.astype(jnp.float32)
    diff = p[:, :, None, :] - g[:, None, :, :]
    d2 = jnp.sum(diff * diff, axis=-1)            # (B, N, M)
    d_x = jnp.min(d2, axis=2)                     # (B, N)
    d_y = jnp.min(d2, axis=1)                     # (B, M)
    return jnp.sum(d_x, axis=1) / d2.shape[1] + jnp.sum(d_y, axis=1) / d2.shape[2]


if __name__ == "__main__":
    key = jax.random.PRNGKey(0)
    kp, kg = jax.random.split(key)

    # Small, deliberately non-tile-aligned shapes so the tail-padding masks and
    # the multi-tile (2x2) accumulator paths are exercised.
    B, N, M, D = 2, 200, 176, 3
    prediction = jax.random.normal(kp, (B, N, D), dtype=jnp.float32)
    ground_truth = jax.random.normal(kg, (B, M, D), dtype=jnp.float32)

    out = cd_loss(prediction, ground_truth, tile_n=128, tile_m=128)
    jax.block_until_ready(out)
    ref = cd_loss_ref(prediction, ground_truth)
    assert out.shape == (B,)
    assert jnp.allclose(out, ref, atol=1e-3, rtol=1e-3), (out, ref)

    # Tile-aligned path with default tile sizes (single tile per axis).
    out2 = cd_loss(prediction[:, :128], ground_truth[:, :128])
    jax.block_until_ready(out2)
    ref2 = cd_loss_ref(prediction[:, :128], ground_truth[:, :128])
    assert jnp.allclose(out2, ref2, atol=1e-3, rtol=1e-3), (out2, ref2)

    print("KERNEL_OK")
</pallas_src>

<mosaic_0001>
module attributes {stable_mosaic.version = 11 : i64} {
  func.func @_cd_loss_kernel(%arg0: i32, %arg1: i32, %arg2: i32, %arg3: memref<1x5x128xf32, #tpu.memory_space<vmem>>, %arg4: memref<1x5x128xf32, #tpu.memory_space<vmem>>, %arg5: memref<1x1x128xf32, #tpu.memory_space<vmem>>, %arg6: memref<128x1xf32, #tpu.memory_space<vmem>>, %arg7: memref<2x1x128xf32, #tpu.memory_space<vmem>>) attributes {dimension_semantics = [#tpu.dimension_semantics<parallel>, #tpu.dimension_semantics<arbitrary>, #tpu.dimension_semantics<arbitrary>], iteration_bounds = array<i64: 2, 2, 2>, scalar_prefetch = 0 : i64, scratch_operands = 2 : i64, tpu.core_type = #tpu.core_type<tc>, window_params = [{transform_indices = @transform_0, window_bounds = array<i64: 1, 5, 128>}, {transform_indices = @transform_1, window_bounds = array<i64: 1, 5, 128>}, {transform_indices = @transform_2, window_bounds = array<i64: 1, 1, 128>}]} {
    %c0 = arith.constant 0 : index
    %c0_0 = arith.constant 0 : index
    %c0_1 = arith.constant 0 : index
    %0 = vector.load %arg3[%c0, %c0_0, %c0_1] : memref<1x5x128xf32, #tpu.memory_space<vmem>>, vector<1x5x128xf32>
    %1 = vector.shape_cast %0 : vector<1x5x128xf32> to vector<5x128xf32>
    %c0_2 = arith.constant 0 : index
    %c0_3 = arith.constant 0 : index
    %c0_4 = arith.constant 0 : index
    %2 = vector.load %arg4[%c0_2, %c0_3, %c0_4] : memref<1x5x128xf32, #tpu.memory_space<vmem>>, vector<1x5x128xf32>
    %3 = vector.shape_cast %2 : vector<1x5x128xf32> to vector<5x128xf32>
    %cst = arith.constant dense<0.000000e+00> : vector<128x128xf32>
    %4 = tpu.matmul %1, %3, %cst {dimension_numbers = #tpu.dot_dimension_numbers<[0], [0], [1], [1], [0, 1, 1, 1], [], []>} : vector<5x128xf32>, vector<5x128xf32>, vector<128x128xf32> -> vector<128x128xf32>
    %cst_5 = arith.constant dense<0xFF800000> : vector<128xf32>
    %5 = vector.multi_reduction <maximumf>, %4, %cst_5 [1] : vector<128x128xf32> to vector<128xf32>
    %6 = vector.shape_cast %5 : vector<128xf32> to vector<128x1xf32>
    %cst_6 = arith.constant dense<0xFF800000> : vector<128xf32>
    %7 = vector.multi_reduction <maximumf>, %4, %cst_6 [0] : vector<128x128xf32> to vector<128xf32>
    %8 = vector.shape_cast %7 : vector<128xf32> to vector<1x128xf32>
    %c0_i32 = arith.constant 0 : i32
    %9 = arith.cmpi eq, %arg2, %c0_i32 : i32
    %10 = arith.extui %9 : i1 to i32
    %c0_i32_7 = arith.constant 0 : i32
    %11 = arith.cmpi ne, %10, %c0_i32_7 : i32
    scf.if %11 {
      %cst_24 = arith.constant 0xFF800000 : f32
      %37 = vector.broadcast %cst_24 : f32 to vector<128x1xf32>
      %c0_25 = arith.constant 0 : index
      %c0_26 = arith.constant 0 : index
      %38 = vector.load %arg6[%c0_25, %c0_26] : memref<128x1xf32, #tpu.memory_space<vmem>>, vector<128x1xf32>
      tpu.vector_store %arg6[%c0_25, %c0_26], %37 {strides = array<i32>} : memref<128x1xf32, #tpu.memory_space<vmem>>, vector<128x1xf32>,
    } else {
    }
    %c0_8 = arith.constant 0 : index
    %c0_9 = arith.constant 0 : index
    %12 = vector.load %arg6[%c0_8, %c0_9] : memref<128x1xf32, #tpu.memory_space<vmem>>, vector<128x1xf32>
    %13 = arith.maximumf %12, %6 : vector<128x1xf32>
    %c0_10 = arith.constant 0 : index
    %c0_11 = arith.constant 0 : index
    %14 = vector.load %arg6[%c0_10, %c0_11] : memref<128x1xf32, #tpu.memory_space<vmem>>, vector<128x1xf32>
    tpu.vector_store %arg6[%c0_10, %c0_11], %13 {strides = array<i32>} : memref<128x1xf32, #tpu.memory_space<vmem>>, vector<128x1xf32>,
    %c0_i32_12 = arith.constant 0 : i32
    %15 = arith.cmpi eq, %arg1, %c0_i32_12 : i32
    %16 = arith.extui %15 : i1 to i32
    %c0_i32_13 = arith.constant 0 : i32
    %17 = arith.cmpi ne, %16, %c0_i32_13 : i32
    scf.if %17 {
      %cst_24 = arith.constant 0xFF800000 : f32
      %37 = vector.broadcast %cst_24 : f32 to vector<1x128xf32>
      %38 = arith.index_cast %arg2 : i32 to index
      %c0_25 = arith.constant 0 : index
      %c0_26 = arith.constant 0 : index
      %39 = vector.load %arg7[%38, %c0_25, %c0_26] : memref<2x1x128xf32, #tpu.memory_space<vmem>>, vector<1x1x128xf32>
      %40 = vector.shape_cast %39 : vector<1x1x128xf32> to vector<1x128xf32>
      %41 = vector.shape_cast %37 : vector<1x128xf32> to vector<1x1x128xf32>
      tpu.vector_store %arg7[%38, %c0_25, %c0_26], %41 {strides = array<i32>} : memref<2x1x128xf32, #tpu.memory_space<vmem>>, vector<1x1x128xf32>,
    } else {
    }
    %18 = arith.index_cast %arg2 : i32 to index
    %c0_14 = arith.constant 0 : index
    %c0_15 = arith.constant 0 : index
    %19 = vector.load %arg7[%18, %c0_14, %c0_15] : memref<2x1x128xf32, #tpu.memory_space<vmem>>, vector<1x1x128xf32>
    %20 = vector.shape_cast %19 : vector<1x1x128xf32> to vector<1x128xf32>
    %21 = arith.maximumf %20, %8 : vector<1x128xf32>
    %22 = arith.index_cast %arg2 : i32 to index
    %c0_16 = arith.constant 0 : index
    %c0_17 = arith.constant 0 : index
    %23 = vector.load %arg7[%22, %c0_16, %c0_17] : memref<2x1x128xf32, #tpu.memory_space<vmem>>, vector<1x1x128xf32>
    %24 = vector.shape_cast %23 : vector<1x1x128xf32> to vector<1x128xf32>
    %25 = vector.shape_cast %21 : vector<1x128xf32> to vector<1x1x128xf32>
    tpu.vector_store %arg7[%22, %c0_16, %c0_17], %25 {strides = array<i32>} : memref<2x1x128xf32, #tpu.memory_space<vmem>>, vector<1x1x128xf32>,
    %c0_i32_18 = arith.constant 0 : i32
    %26 = arith.cmpi eq, %arg1, %c0_i32_18 : i32
    %c0_i32_19 = arith.constant 0 : i32
    %27 = arith.cmpi eq, %arg2, %c0_i32_19 : i32
    %28 = arith.andi %26, %27 : i1
    %29 = arith.extui %28 : i1 to i32
    %c0_i32_20 = arith.constant 0 : i32
    %30 = arith.cmpi ne, %29, %c0_i32_20 : i32
    scf.if %30 {
      %cst_24 = arith.constant 0.000000e+00 : f32
      %37 = vector.broadcast %cst_24 : f32 to vector<1x1x128xf32>
      %c0_25 = arith.constant 0 : index
      %c0_26 = arith.constant 0 : index
      %c0_27 = arith.constant 0 : index
      %38 = vector.load %arg5[%c0_25, %c0_26, %c0_27] : memref<1x1x128xf32, #tpu.memory_space<vmem>>, vector<1x1x128xf32>
      tpu.vector_store %arg5[%c0_25, %c0_26, %c0_27], %37 {strides = array<i32>} : memref<1x1x128xf32, #tpu.memory_space<vmem>>, vector<1x1x128xf32>,
    } else {
    }
    %c1_i32 = arith.constant 1 : i32
    %31 = arith.cmpi eq, %arg2, %c1_i32 : i32
    %32 = arith.extui %31 : i1 to i32
    %c0_i32_21 = arith.constant 0 : i32
    %33 = arith.cmpi ne, %32, %c0_i32_21 : i32
    scf.if %33 {
      %c0_24 = arith.constant 0 : index
      %c0_25 = arith.constant 0 : index
      %37 = vector.load %arg6[%c0_24, %c0_25] : memref<128x1xf32, #tpu.memory_space<vmem>>, vector<128x1xf32>
      %cst_26 = arith.constant -2.000000e+00 : f32
      %38 = vector.broadcast %cst_26 : f32 to vector<128x1xf32>
      %39 = arith.mulf %38, %37 : vector<128x1xf32>
      %cst_27 = arith.constant 0.000000e+00 : f32
      %40 = vector.broadcast %cst_27 : f32 to vector<128x1xf32>
      %41 = arith.maximumf %39, %40 : vector<128x1xf32>
      %c128_i32 = arith.constant 128 : i32
      %42 = arith.muli %arg1, %c128_i32 : i32
      %43 = tpu.iota {dimensions = array<i32: 0>} : vector<128x1xi32>
      %44 = vector.broadcast %42 : i32 to vector<128x1xi32>
      %45 = arith.addi %44, %43 : vector<128x1xi32>
      %c200_i32 = arith.constant 200 : i32
      %46 = vector.broadcast %c200_i32 : i32 to vector<128x1xi32>
      %47 = arith.cmpi slt, %45, %46 : vector<128x1xi32>
      %cst_28 = arith.constant 0.000000e+00 : f32
      %48 = vector.broadcast %cst_28 : f32 to vector<128x1xf32>
      %49 = arith.select %47, %41, %48 : vector<128x1xi1>, vector<128x1xf32>
      %c0_29 = arith.constant 0 : index
      %c0_30 = arith.constant 0 : index
      %c0_31 = arith.constant 0 : index
      %50 = vector.load %arg5[%c0_29, %c0_30, %c0_31] : memref<1x1x128xf32, #tpu.memory_space<vmem>>, vector<1x1x128xf32>
      %51 = vector.shape_cast %49 : vector<128x1xf32> to vector<1x128x1xf32>
      %cst_32 = arith.constant dense<0.000000e+00> : vector<1xf32>
      %52 = vector.multi_reduction <add>, %51, %cst_32 [1, 2] : vector<1x128x1xf32> to vector<1xf32>
      %53 = vector.shape_cast %52 : vector<1xf32> to vector<1x1x1xf32>
      %54 = vector.extract %53[0, 0, 0] : f32 from vector<1x1x1xf32>
      %cst_33 = arith.constant 2.000000e+02 : f32
      %55 = arith.divf %54, %cst_33 : f32
      %56 = vector.broadcast %55 : f32 to vector<1x1x128xf32>
      %57 = arith.addf %50, %56 : vector<1x1x128xf32>
      %c0_34 = arith.constant 0 : index
      %c0_35 = arith.constant 0 : index
      %c0_36 = arith.constant 0 : index
      %58 = vector.load %arg5[%c0_34, %c0_35, %c0_36] : memref<1x1x128xf32, #tpu.memory_space<vmem>>, vector<1x1x128xf32>
      tpu.vector_store %arg5[%c0_34, %c0_35, %c0_36], %57 {strides = array<i32>} : memref<1x1x128xf32, #tpu.memory_space<vmem>>, vector<1x1x128xf32>,
    } else {
    }
    %c1_i32_22 = arith.constant 1 : i32
    %34 = arith.cmpi eq, %arg1, %c1_i32_22 : i32
    %35 = arith.extui %34 : i1 to i32
    %c0_i32_23 = arith.constant 0 : i32
    %36 = arith.cmpi ne, %35, %c0_i32_23 : i32
    scf.if %36 {
      %37 = arith.index_cast %arg2 : i32 to index
      %c0_24 = arith.constant 0 : index
      %c0_25 = arith.constant 0 : index
      %38 = vector.load %arg7[%37, %c0_24, %c0_25] : memref<2x1x128xf32, #tpu.memory_space<vmem>>, vector<1x1x128xf32>
      %39 = vector.shape_cast %38 : vector<1x1x128xf32> to vector<1x128xf32>
      %cst_26 = arith.constant -2.000000e+00 : f32
      %40 = vector.broadcast %cst_26 : f32 to vector<1x128xf32>
      %41 = arith.mulf %40, %39 : vector<1x128xf32>
      %cst_27 = arith.constant 0.000000e+00 : f32
      %42 = vector.broadcast %cst_27 : f32 to vector<1x128xf32>
      %43 = arith.maximumf %41, %42 : vector<1x128xf32>
      %c128_i32 = arith.constant 128 : i32
      %44 = arith.muli %arg2, %c128_i32 : i32
      %45 = tpu.iota {dimensions = array<i32: 1>} : vector<1x128xi32>
      %46 = vector.broadcast %44 : i32 to vector<1x128xi32>
      %47 = arith.addi %46, %45 : vector<1x128xi32>
      %c176_i32 = arith.constant 176 : i32
      %48 = vector.broadcast %c176_i32 : i32 to vector<1x128xi32>
      %49 = arith.cmpi slt, %47, %48 : vector<1x128xi32>
      %cst_28 = arith.constant 0.000000e+00 : f32
      %50 = vector.broadcast %cst_28 : f32 to vector<1x128xf32>
      %51 = arith.select %49, %43, %50 : vector<1x128xi1>, vector<1x128xf32>
      %c0_29 = arith.constant 0 : index
      %c0_30 = arith.constant 0 : index
      %c0_31 = arith.constant 0 : index
      %52 = vector.load %arg5[%c0_29, %c0_30, %c0_31] : memref<1x1x128xf32, #tpu.memory_space<vmem>>, vector<1x1x128xf32>
      %53 = vector.shape_cast %51 : vector<1x128xf32> to vector<1x1x128xf32>
      %cst_32 = arith.constant dense<0.000000e+00> : vector<1xf32>
      %54 = vector.multi_reduction <add>, %53, %cst_32 [1, 2] : vector<1x1x128xf32> to vector<1xf32>
      %55 = vector.shape_cast %54 : vector<1xf32> to vector<1x1x1xf32>
      %56 = vector.extract %55[0, 0, 0] : f32 from vector<1x1x1xf32>
      %cst_33 = arith.constant 1.760000e+02 : f32
      %57 = arith.divf %56, %cst_33 : f32
      %58 = vector.broadcast %57 : f32 to vector<1x1x128xf32>
      %59 = arith.addf %52, %58 : vector<1x1x128xf32>
      %c0_34 = arith.constant 0 : index
      %c0_35 = arith.constant 0 : index
      %c0_36 = arith.constant 0 : index
      %60 = vector.load %arg5[%c0_34, %c0_35, %c0_36] : memref<1x1x128xf32, #tpu.memory_space<vmem>>, vector<1x1x128xf32>
      tpu.vector_store %arg5[%c0_34, %c0_35, %c0_36], %59 {strides = array<i32>} : memref<1x1x128xf32, #tpu.memory_space<vmem>>, vector<1x1x128xf32>,
    } else {
    }
    return
  }
  func.func @transform_0(%arg0: i32, %arg1: i32, %arg2: i32) -> (i32, i32, i32) {
    %c0_i32 = arith.constant 0 : i32
    %c0_i32_0 = arith.constant 0 : i32
    return %arg0, %c0_i32, %arg1 : i32, i32, i32
  }
  func.func @transform_1(%arg0: i32, %arg1: i32, %arg2: i32) -> (i32, i32, i32) {
    %c0_i32 = arith.constant 0 : i32
    %c0_i32_0 = arith.constant 0 : i32
    return %arg0, %c0_i32, %arg2 : i32, i32, i32
  }
  func.func @transform_2(%arg0: i32, %arg1: i32, %arg2: i32) -> (i32, i32, i32) {
    %c0_i32 = arith.constant 0 : i32
    %c0_i32_0 = arith.constant 0 : i32
    %c0_i32_1 = arith.constant 0 : i32
    return %arg0, %c0_i32, %c0_i32_0 : i32, i32, i32
  }
}

</mosaic_0001>

<llo_original>
// kernel: tpu_custom_call.1
$region0: #{tpu_custom_call.1}
  #allocation0 [shape = 'u32[]', space=smem, size = 0x4, offset = 0x4, fixed_abs, tag = 'smem constant byte address 0x4 - core index']
  #allocation1 [shape = 'u32[72,128]{1,0:T(1,128)}', space=vmem, size = 0x9000, scoped, tag = 'internal scratch']
  #allocation2 [shape = 'f32[128,1]{1,0:T(8,128)}', space=vmem, size = 0x10000, scoped, tag = 'scratch operand']
  #allocation3 [shape = 'f32[2,1,128]{2,1,0:T(1,128)}', space=vmem, size = 0x400, scoped, tag = 'scratch operand']
  %s0 = inlined_call_operand.vmem [shape: f32[2,5,256], index: 0, kind: input, shape index: {}]
  %s1 = inlined_call_operand.vmem [shape: f32[2,5,256], index: 1, kind: input, shape index: {}]
  %s2 = inlined_call_operand.hbm [shape: f32[2,1,128], index: 2, kind: output, shape index: {}]
  %s3 = sld [smem:[#allocation0]]
  $region61: #{tpu_custom_call.1} parent=0
    _
  %s5 = ssub.s32 1, %s3
  %s6 = scalar_select 0, %s5, %s3
  $region1: #{tpu_custom_call.1} parent=0
    #allocation4 [shape = 'u8[1024]{0}', space=vmem, size = 0x400, scoped, tag = 'output window, operand 0']
    #allocation5 [shape = 's32[2]{0}', space=sflag, size = 0x8, scoped, tag = 'scoped memory for tpu_custom_call.1']
    %7 = vsyncpa [#allocation5], 0
    %s8 = scalar_lea.sflag [#allocation5], 1
    %9 = vsyncpa %s8, 0
    loop: start=0, step=1, limit=10
    $region2: #{tpu_custom_call.1} parent=1 // loop_pre_header
      _
    $region3: #{tpu_custom_call.1} parent=1 // loop_header
      %s11 = sphi 0, %s15
      %p12 = scmp.ge.s32.totalorder %s11, 10
      %s18 = sphi 0, %s37
      %s19 = sphi 0, %s33
      %s20 = sphi 0, %s29
      %s21 = sphi 0, %s18
      %s22 = sphi 0, %s19
      %s23 = sphi 0, %s20
      %s24 = sphi 0, %s21
      %s25 = sphi 0, %s22
      %s26 = sphi 0, %s23
      %s42 = sphi 0, %s44
      %s45 = sphi 0, %s42
      %s46 = sphi 0, %s45
      %s62 = sphi 0, %s46
      %s70 = sphi 0, %s72
      %s73 = sphi 0, %s70
      %s74 = sphi 0, %s73
      %s90 = sphi 0, %s74
      %s96 = sphi 0, %s98
      %s99 = sphi 0, %s96
      %s100 = sphi 0, %s99
      %s116 = sphi 0, %s100
    $region4: #{tpu_custom_call.1} parent=1 // loop_header_branch
      %14 = sbr.rel (%p12) target = $region8
    $region5: #{tpu_custom_call.1} parent=1 // loop_body
      %s16 = ssub.s32 %s11, 1
      %s17 = ssub.s32 %s11, 2
      %s27 = sadd.s32 1, %s20
      %p28 = scmp.ge.s32.totalorder %s27, 2
      %s29 = scalar_select %p28, 0, %s27
      %s30 = sadd.s32 1, %s19
      %s31 = scalar_select %p28, %s30, %s19
      %p32 = scmp.ge.s32.totalorder %s31, 2
      %s33 = scalar_select %p32, 0, %s31
      %s34 = sadd.s32 1, %s18
      %s35 = scalar_select %p32, %s34, %s18
      %p36 = scmp.ge.s32.totalorder %s35, 2
      %s37 = scalar_select %p36, 0, %s35
      %s38 = ssub.s32 %s18, %s37
      %s39 = ssub.s32 %s19, %s33
      %s40 = sor.u32 %s38, %s39
      %p41 = scmp.eq.s32.totalorder %s40, 0
      %s43 = sadd.s32 %s42, 1
      %s44 = scalar_select %p41, %s42, %s43
      %p47 = pneg %p41
      %p48 = scmp.eq.s32.totalorder %s11, 7
      %p49 = por %p47, %p48
      %p50 = scmp.ne.s32.totalorder %s42, %s45
      %p51 = scmp.eq.s32.totalorder %s11, 0
      %p52 = por %p50, %p51
      %p53 = scmp.ne.s32.totalorder %s42, %s45
      %p54 = scmp.eq.s32.totalorder %s16, 7
      %p55 = por %p53, %p54
      %p56 = scmp.ne.s32.totalorder %s45, %s46
      %p57 = scmp.eq.s32.totalorder %s16, 0
      %p58 = por %p56, %p57
      %p59 = scmp.ne.s32.totalorder %s45, %s46
      %p60 = scmp.eq.s32.totalorder %s17, 7
      %p61 = por %p59, %p60
      %p63 = scmp.ne.s32.totalorder %s46, %s62
      %p64 = scmp.eq.s32.totalorder %s17, 0
      %p65 = por %p63, %p64
      %s66 = ssub.s32 %s18, %s37
      %s67 = ssub.s32 %s20, %s29
      %s68 = sor.u32 %s66, %s67
      %p69 = scmp.eq.s32.totalorder %s68, 0
      %s71 = sadd.s32 %s70, 1
      %s72 = scalar_select %p69, %s70, %s71
      %p75 = pneg %p69
      %p76 = scmp.eq.s32.totalorder %s11, 7
      %p77 = por %p75, %p76
      %p78 = scmp.ne.s32.totalorder %s70, %s73
      %p79 = scmp.eq.s32.totalorder %s11, 0
      %p80 = por %p78, %p79
      %p81 = scmp.ne.s32.totalorder %s70, %s73
      %p82 = scmp.eq.s32.totalorder %s16, 7
      %p83 = por %p81, %p82
      %p84 = scmp.ne.s32.totalorder %s73, %s74
      %p85 = scmp.eq.s32.totalorder %s16, 0
      %p86 = por %p84, %p85
      %p87 = scmp.ne.s32.totalorder %s73, %s74
      %p88 = scmp.eq.s32.totalorder %s17, 7
      %p89 = por %p87, %p88
      %p91 = scmp.ne.s32.totalorder %s74, %s90
      %p92 = scmp.eq.s32.totalorder %s17, 0
      %p93 = por %p91, %p92
      %s94 = ssub.s32 %s18, %s37
      %p95 = scmp.eq.s32.totalorder %s94, 0
      %s97 = sadd.s32 %s96, 1
      %s98 = scalar_select %p95, %s96, %s97
      %p101 = pneg %p95
      %p102 = scmp.eq.s32.totalorder %s11, 7
      %p103 = por %p101, %p102
      %p104 = scmp.ne.s32.totalorder %s96, %s99
      %p105 = scmp.eq.s32.totalorder %s11, 0
      %p106 = por %p104, %p105
      %p107 = scmp.ne.s32.totalorder %s96, %s99
      %p108 = scmp.eq.s32.totalorder %s16, 7
      %p109 = por %p107, %p108
      %p110 = scmp.ne.s32.totalorder %s99, %s100
      %p111 = scmp.eq.s32.totalorder %s16, 0
      %p112 = por %p110, %p111
      %p113 = scmp.ne.s32.totalorder %s99, %s100
      %p114 = scmp.eq.s32.totalorder %s17, 7
      %p115 = por %p113, %p114
      %p117 = scmp.ne.s32.totalorder %s100, %s116
      %p118 = scmp.eq.s32.totalorder %s17, 0
      %p119 = por %p117, %p118
      %p120 = scmp.le.s32.totalorder 1, %s11
      %p121 = scmp.lt.s32.totalorder %s11, 9
      %p122 = pnand %p120, %p121
      %p123 = pneg %p122
      // Predicated region
      $region9: #{tpu_custom_call.1} parent=5 // pred_check
        _
      $region10: #{tpu_custom_call.1} parent=5 // pred_check_branch
        %125 = sbr.rel (%p122) target = $region12
      $region11: #{tpu_custom_call.1} parent=5 // pred_region
        %s126 = ssub.s32 %s11, 1
      $region12: #{tpu_custom_call.1} parent=5 // pred_fallthru
        _
      %p127 = scmp.lt.s32.totalorder %s11, 8
      // Predicated region
      $region13: #{tpu_custom_call.1} parent=5 // pred_check
        %p128 = pneg %p127
      $region14: #{tpu_custom_call.1} parent=5 // pred_check_branch
        %130 = sbr.rel (%p128) target = $region16
      $region15: #{tpu_custom_call.1} parent=5 // pred_region
        // Predicated region
        $region17: #{tpu_custom_call.1} parent=15 // pred_check
          %p131 = pneg %p52
        $region18: #{tpu_custom_call.1} parent=15 // pred_check_branch
          %133 = sbr.rel (%p131) target = $region20
        $region19: #{tpu_custom_call.1} parent=15 // pred_region
          %p134 = scmp.lt.s32.totalorder %s18, 1
          %s135 = scalar_select %p134, %s18, 1
          %p136 = scmp.lt.s32.totalorder %s19, 1
          %s137 = scalar_select %p136, %s19, 1
          %s138 = smul.addr %s135, 2
          %s139 = sadd.s32 %s137, %s138
          %s140 = smul.addr %s139, 8
          %s141 = scalar_lea.vmem %s0, %s140
        $region20: #{tpu_custom_call.1} parent=15 // pred_fallthru
          _
        // Predicated region
        $region21: #{tpu_custom_call.1} parent=15 // pred_check
          %p142 = pneg %p80
        $region22: #{tpu_custom_call.1} parent=15 // pred_check_branch
          %144 = sbr.rel (%p142) target = $region24
        $region23: #{tpu_custom_call.1} parent=15 // pred_region
          %p145 = scmp.lt.s32.totalorder %s18, 1
          %s146 = scalar_select %p145, %s18, 1
          %p147 = scmp.lt.s32.totalorder %s20, 1
          %s148 = scalar_select %p147, %s20, 1
          %s149 = smul.addr %s146, 2
          %s150 = sadd.s32 %s148, %s149
          %s151 = smul.addr %s150, 8
          %s152 = scalar_lea.vmem %s1, %s151
        $region24: #{tpu_custom_call.1} parent=15 // pred_fallthru
          _
      $region16: #{tpu_custom_call.1} parent=5 // pred_fallthru
        _
      %p153 = scmp.le.s32.totalorder 1, %s11
      %p154 = scmp.lt.s32.totalorder %s11, 9
      %p155 = pnand %p153, %p154
      %p156 = pneg %p155
      // Predicated region
      $region25: #{tpu_custom_call.1} parent=5 // pred_check
        _
      $region26: #{tpu_custom_call.1} parent=5 // pred_check_branch
        %158 = sbr.rel (%p155) target = $region28
      $region27: #{tpu_custom_call.1} parent=5 // pred_region
        %s159 = ssub.s32 %s11, 1
        %p160 = scmp.lt.s32.totalorder %s21, 1
        %s161 = scalar_select %p160, %s21, 1
        %p162 = scmp.lt.s32.totalorder %s22, 1
        %s163 = scalar_select %p162, %s22, 1
        %s164 = smul.addr %s161, 2
        %s165 = sadd.s32 %s163, %s164
        %s166 = smul.addr %s165, 8
        %s167 = scalar_lea.vmem %s0, %s166
        %p168 = pneg %p58
        %p169 = pneg %p55
        %p170 = scmp.lt.s32.totalorder %s21, 1
        %s171 = scalar_select %p170, %s21, 1
        %p172 = scmp.lt.s32.totalorder %s23, 1
        %s173 = scalar_select %p172, %s23, 1
        %s174 = smul.addr %s171, 2
        %s175 = sadd.s32 %s173, %s174
        %s176 = smul.addr %s175, 8
        %s177 = scalar_lea.vmem %s1, %s176
        %p178 = pneg %p86
        %p179 = pneg %p83
        %p180 = pneg %p112
        %p181 = pneg %p109
        %s182 = sand.u32 %s99, 1
        %s183 = scalar_lea.sflag [#allocation5], %s182
        %s184 = sand.u32 %s99, 1
        %s185 = scalar_lea.vmem [#allocation4], %s184
        %p186 = scmp.lt.s32.totalorder %s21, 1
        %s187 = scalar_select %p186, %s21, 1
        %p188 = scmp.lt.s32.totalorder %s22, 1
        %s189 = scalar_select %p188, %s22, 1
        %s190 = smul.addr %s187, 2
        %s191 = sadd.s32 %s189, %s190
        %s192 = smul.addr %s191, 8
        %s193 = scalar_lea.vmem %s0, %s192
        %p194 = scmp.lt.s32.totalorder %s21, 1
        %s195 = scalar_select %p194, %s21, 1
        %p196 = scmp.lt.s32.totalorder %s23, 1
        %s197 = scalar_select %p196, %s23, 1
        %s198 = smul.addr %s195, 2
        %s199 = sadd.s32 %s197, %s198
        %s200 = smul.addr %s199, 8
        %s201 = scalar_lea.vmem %s1, %s200
        %v202 = vld [vmem:[%s193] sm:$0x1f]
        %v203 = vld [vmem:[%s201] sm:$0x1f]
        %204 = vxpose.xlu0.b32.start [1/16] %v202, 128
        %205 = vxpose.xlu0.b32.cont [2/16] 0.0, 128
        %206 = vxpose.xlu0.b32.cont [3/16] 0.0, 128
        %207 = vxpose.xlu0.b32.cont [4/16] 0.0, 128
        %208 = vxpose.xlu0.b32.cont [5/16] 0.0, 128
        %209 = vxpose.xlu0.b32.cont [6/16] 0.0, 128
        %210 = vxpose.xlu0.b32.cont [7/16] 0.0, 128
        %211 = vxpose.xlu0.b32.cont [8/16] 0.0, 128
        %212 = vxpose.xlu0.b32.cont [9/16] 0.0, 128
        %213 = vxpose.xlu0.b32.cont [10/16] 0.0, 128
        %214 = vxpose.xlu0.b32.cont [11/16] 0.0, 128
        %215 = vxpose.xlu0.b32.cont [12/16] 0.0, 128
        %216 = vxpose.xlu0.b32.cont [13/16] 0.0, 128
        %217 = vxpose.xlu0.b32.cont [14/16] 0.0, 128
        %218 = vxpose.xlu0.b32.cont [15/16] 0.0, 128
        %219 = vxpose.xlu0.b32.end [16/16] 0.0, 128
        %v220 = vpop.trf.xlu0
        %v221 = vpop.trf.xlu0
        %v222 = vpop.trf.xlu0
        %v223 = vpop.trf.xlu0
        %v224 = vpop.trf.xlu0
        %v225 = vpop.trf.xlu0
        %v226 = vpop.trf.xlu0
        %v227 = vpop.trf.xlu0
        %v228 = vpop.trf.xlu0
        %v229 = vpop.trf.xlu0
        %v230 = vpop.trf.xlu0
        %v231 = vpop.trf.xlu0
        %v232 = vpop.trf.xlu0
        %v233 = vpop.trf.xlu0
        %v234 = vpop.trf.xlu0
        %v235 = vpop.trf.xlu0
        %vm236 = vcmask 39936
        %v238 = vsel %vm236, %v220, 0
        %v241 = vsel %vm236, %v221, 0
        %v244 = vsel %vm236, %v222, 0
        %v247 = vsel %vm236, %v223, 0
        %v250 = vsel %vm236, %v224, 0
        %v253 = vsel %vm236, %v225, 0
        %v256 = vsel %vm236, %v226, 0
        %v259 = vsel %vm236, %v227, 0
        %v262 = vsel %vm236, %v228, 0
        %v265 = vsel %vm236, %v229, 0
        %v268 = vsel %vm236, %v230, 0
        %v271 = vsel %vm236, %v231, 0
        %v274 = vsel %vm236, %v232, 0
        %v277 = vsel %vm236, %v233, 0
        %v280 = vsel %vm236, %v234, 0
        %v283 = vsel %vm236, %v235, 0
        %vm285 = vcmask 1044480
        %v287 = vsel %vm285, %v203, 0
        %289 = vmatpush.msra.mxu0 0.0
        %290 = vmatpush.msra.mxu0 0.0
        %291 = vmatpush.msra.mxu0 0.0
        %292 = vmatpush.msra.mxu0 0.0
        %293 = vmatpush.msra.mxu0 0.0
        %294 = vmatpush.msra.mxu0 0.0
        %295 = vmatpush.msra.mxu0 0.0
        %296 = vmatpush.msra.mxu0 0.0
        %297 = vmatpush.msra.mxu0 0.0
        %298 = vmatpush.msra.mxu0 0.0
        %299 = vmatpush.msra.mxu0 0.0
        %300 = vmatpush.msra.mxu0 0.0
        %301 = vmatpush.msra.mxu0 0.0
        %302 = vmatpush.msra.mxu0 0.0
        %303 = vmatpush.msra.mxu0 0.0
        %304 = vmatpush.msra.mxu0 %v287
        %305 = vmatmul.f32.gmra.mxu0 %v238
        %v306 = vpop.f32.mrf.mxu0
        %v307 = vadd.f32 0.0, %v306
        %308 = vmatmul.f32.gmra.mxu0 %v241
        %v309 = vpop.f32.mrf.mxu0
        %v310 = vadd.f32 0.0, %v309
        %311 = vmatmul.f32.gmra.mxu0 %v244
        %v312 = vpop.f32.mrf.mxu0
        %v313 = vadd.f32 0.0, %v312
        %314 = vmatmul.f32.gmra.mxu0 %v247
        %v315 = vpop.f32.mrf.mxu0
        %v316 = vadd.f32 0.0, %v315
        %317 = vmatmul.f32.gmra.mxu0 %v250
        %v318 = vpop.f32.mrf.mxu0
        %v319 = vadd.f32 0.0, %v318
        %320 = vmatmul.f32.gmra.mxu0 %v253
        %v321 = vpop.f32.mrf.mxu0
        %v322 = vadd.f32 0.0, %v321
        %323 = vmatmul.f32.gmra.mxu0 %v256
        %v324 = vpop.f32.mrf.mxu0
        %v325 = vadd.f32 0.0, %v324
        %326 = vmatmul.f32.gmra.mxu0 %v259
        %v327 = vpop.f32.mrf.mxu0
        %v328 = vadd.f32 0.0, %v327
        %329 = vmatmul.f32.gmra.mxu0 %v262
        %v330 = vpop.f32.mrf.mxu0
        %v331 = vadd.f32 0.0, %v330
        %332 = vmatmul.f32.gmra.mxu0 %v265
        %v333 = vpop.f32.mrf.mxu0
        %v334 = vadd.f32 0.0, %v333
        %335 = vmatmul.f32.gmra.mxu0 %v268
        %v336 = vpop.f32.mrf.mxu0
        %v337 = vadd.f32 0.0, %v336
        %338 = vmatmul.f32.gmra.mxu0 %v271
        %v339 = vpop.f32.mrf.mxu0
        %v340 = vadd.f32 0.0, %v339
        %341 = vmatmul.f32.gmra.mxu0 %v274
        %v342 = vpop.f32.mrf.mxu0
        %v343 = vadd.f32 0.0, %v342
        %344 = vmatmul.f32.gmra.mxu0 %v277
        %v345 = vpop.f32.mrf.mxu0
        %v346 = vadd.f32 0.0, %v345
        %347 = vmatmul.f32.gmra.mxu0 %v280
        %v348 = vpop.f32.mrf.mxu0
        %v349 = vadd.f32 0.0, %v348
        %350 = vmatmul.f32.gmra.mxu0 %v283
        %v351 = vpop.f32.mrf.mxu0
        %v352 = vadd.f32 0.0, %v351
        %353 = vdwg.mxu0
        %354 = vmax.xlane.f32.xlu0 %v307
        %v355 = vpop.xlane.xlu0 %354
        %356 = vmax.xlane.f32.xlu0 %v310
        %v357 = vpop.xlane.xlu0 %356
        %358 = vmax.xlane.f32.xlu0 %v313
        %v359 = vpop.xlane.xlu0 %358
        %360 = vmax.xlane.f32.xlu0 %v316
        %v361 = vpop.xlane.xlu0 %360
        %362 = vmax.xlane.f32.xlu0 %v319
        %v363 = vpop.xlane.xlu0 %362
        %364 = vmax.xlane.f32.xlu0 %v322
        %v365 = vpop.xlane.xlu0 %364
        %366 = vmax.xlane.f32.xlu0 %v325
        %v367 = vpop.xlane.xlu0 %366
        %368 = vmax.xlane.f32.xlu0 %v328
        %v369 = vpop.xlane.xlu0 %368
        %370 = vmax.xlane.f32.xlu0 %v331
        %v371 = vpop.xlane.xlu0 %370
        %372 = vmax.xlane.f32.xlu0 %v334
        %v373 = vpop.xlane.xlu0 %372
        %374 = vmax.xlane.f32.xlu0 %v337
        %v375 = vpop.xlane.xlu0 %374
        %376 = vmax.xlane.f32.xlu0 %v340
        %v377 = vpop.xlane.xlu0 %376
        %378 = vmax.xlane.f32.xlu0 %v343
        %v379 = vpop.xlane.xlu0 %378
        %380 = vmax.xlane.f32.xlu0 %v346
        %v381 = vpop.xlane.xlu0 %380
        %382 = vmax.xlane.f32.xlu0 %v349
        %v383 = vpop.xlane.xlu0 %382
        %384 = vmax.xlane.f32.xlu0 %v352
        %v385 = vpop.xlane.xlu0 %384
        %v386 = vmax.f32 %v307, %v319
        %v387 = vmax.f32 %v310, %v322
        %v388 = vmax.f32 %v313, %v325
        %v389 = vmax.f32 %v316, %v328
        %v390 = vmax.f32 %v386, %v331
        %v391 = vmax.f32 %v387, %v334
        %v392 = vmax.f32 %v388, %v337
        %v393 = vmax.f32 %v389, %v340
        %v394 = vmax.f32 %v390, %v343
        %v395 = vmax.f32 %v391, %v346
        %v396 = vmax.f32 %v392, %v349
        %v397 = vmax.f32 %v393, %v352
        %v398 = vmax.f32 %v394, %v395
        %v399 = vmax.f32 %v396, %v397
        %v400 = vmax.f32 %v398, %v399
        %v401 = vrot.slane %v400, 4
        %v402 = vmax.f32 %v400, %v401
        %v403 = vrot.slane %v402, 2
        %v404 = vmax.f32 %v402, %v403
        %v405 = vrot.slane %v404, 1
        %v406 = vmax.f32 %v404, %v405
        %p407 = scmp.eq.s32.totalorder %s23, 0
        // Predicated region
        $region29: #{tpu_custom_call.1} parent=27 // pred_check
          %p408 = pneg %p407
        $region30: #{tpu_custom_call.1} parent=27 // pred_check_branch
          %410 = sbr.rel (%p408) target = $region32
        $region31: #{tpu_custom_call.1} parent=27 // pred_region
          %vm411 = vcmask 7168
          %412 = vst.msk [vmem:[#allocation2] sm:$0xff] %vm411, -inf
          %413 = vst.msk [vmem:[#allocation2 + $0x8] sm:$0xff] %vm411, -inf
          %414 = vst.msk [vmem:[#allocation2 + $0x10] sm:$0xff] %vm411, -inf
          %415 = vst.msk [vmem:[#allocation2 + $0x18] sm:$0xff] %vm411, -inf
          %416 = vst.msk [vmem:[#allocation2 + $0x20] sm:$0xff] %vm411, -inf
          %417 = vst.msk [vmem:[#allocation2 + $0x28] sm:$0xff] %vm411, -inf
          %418 = vst.msk [vmem:[#allocation2 + $0x30] sm:$0xff] %vm411, -inf
          %419 = vst.msk [vmem:[#allocation2 + $0x38] sm:$0xff] %vm411, -inf
          %420 = vst.msk [vmem:[#allocation2 + $0x40] sm:$0xff] %vm411, -inf
          %421 = vst.msk [vmem:[#allocation2 + $0x48] sm:$0xff] %vm411, -inf
          %422 = vst.msk [vmem:[#allocation2 + $0x50] sm:$0xff] %vm411, -inf
          %423 = vst.msk [vmem:[#allocation2 + $0x58] sm:$0xff] %vm411, -inf
          %424 = vst.msk [vmem:[#allocation2 + $0x60] sm:$0xff] %vm411, -inf
          %425 = vst.msk [vmem:[#allocation2 + $0x68] sm:$0xff] %vm411, -inf
          %426 = vst.msk [vmem:[#allocation2 + $0x70] sm:$0xff] %vm411, -inf
          %427 = vst.msk [vmem:[#allocation2 + $0x78] sm:$0xff] %vm411, -inf
        $region32: #{tpu_custom_call.1} parent=27 // pred_fallthru
          _
        %v428 = vld [vmem:[#allocation2] sm:$0xff]
        %v429 = vld [vmem:[#allocation2 + $0x8] sm:$0xff]
        %v430 = vld [vmem:[#allocation2 + $0x10] sm:$0xff]
        %v431 = vld [vmem:[#allocation2 + $0x18] sm:$0xff]
        %v432 = vld [vmem:[#allocation2 + $0x20] sm:$0xff]
        %v433 = vld [vmem:[#allocation2 + $0x28] sm:$0xff]
        %v434 = vld [vmem:[#allocation2 + $0x30] sm:$0xff]
        %v435 = vld [vmem:[#allocation2 + $0x38] sm:$0xff]
        %v436 = vld [vmem:[#allocation2 + $0x40] sm:$0xff]
        %v437 = vld [vmem:[#allocation2 + $0x48] sm:$0xff]
        %v438 = vld [vmem:[#allocation2 + $0x50] sm:$0xff]
        %v439 = vld [vmem:[#allocation2 + $0x58] sm:$0xff]
        %v440 = vld [vmem:[#allocation2 + $0x60] sm:$0xff]
        %v441 = vld [vmem:[#allocation2 + $0x68] sm:$0xff]
        %v442 = vld [vmem:[#allocation2 + $0x70] sm:$0xff]
        %v443 = vld [vmem:[#allocation2 + $0x78] sm:$0xff]
        %v444 = vmax.f32 %v428, %v355
        %v445 = vmax.f32 %v429, %v357
        %v446 = vmax.f32 %v430, %v359
        %v447 = vmax.f32 %v431, %v361
        %v448 = vmax.f32 %v432, %v363
        %v449 = vmax.f32 %v433, %v365
        %v450 = vmax.f32 %v434, %v367
        %v451 = vmax.f32 %v435, %v369
        %v452 = vmax.f32 %v436, %v371
        %v453 = vmax.f32 %v437, %v373
        %v454 = vmax.f32 %v438, %v375
        %v455 = vmax.f32 %v439, %v377
        %v456 = vmax.f32 %v440, %v379
        %v457 = vmax.f32 %v441, %v381
        %v458 = vmax.f32 %v442, %v383
        %v459 = vmax.f32 %v443, %v385
        %vm460 = vcmask 7168
        %461 = vst.msk [vmem:[#allocation2] sm:$0xff] %vm460, %v444
        %462 = vst.msk [vmem:[#allocation2 + $0x8] sm:$0xff] %vm460, %v445
        %463 = vst.msk [vmem:[#allocation2 + $0x10] sm:$0xff] %vm460, %v446
        %464 = vst.msk [vmem:[#allocation2 + $0x18] sm:$0xff] %vm460, %v447
        %465 = vst.msk [vmem:[#allocation2 + $0x20] sm:$0xff] %vm460, %v448
        %466 = vst.msk [vmem:[#allocation2 + $0x28] sm:$0xff] %vm460, %v449
        %467 = vst.msk [vmem:[#allocation2 + $0x30] sm:$0xff] %vm460, %v450
        %468 = vst.msk [vmem:[#allocation2 + $0x38] sm:$0xff] %vm460, %v451
        %469 = vst.msk [vmem:[#allocation2 + $0x40] sm:$0xff] %vm460, %v452
        %470 = vst.msk [vmem:[#allocation2 + $0x48] sm:$0xff] %vm460, %v453
        %471 = vst.msk [vmem:[#allocation2 + $0x50] sm:$0xff] %vm460, %v454
        %472 = vst.msk [vmem:[#allocation2 + $0x58] sm:$0xff] %vm460, %v455
        %473 = vst.msk [vmem:[#allocation2 + $0x60] sm:$0xff] %vm460, %v456
        %474 = vst.msk [vmem:[#allocation2 + $0x68] sm:$0xff] %vm460, %v457
        %475 = vst.msk [vmem:[#allocation2 + $0x70] sm:$0xff] %vm460, %v458
        %476 = vst.msk [vmem:[#allocation2 + $0x78] sm:$0xff] %vm460, %v459
        %p477 = scmp.eq.s32.totalorder %s22, 0
        // Predicated region
        $region33: #{tpu_custom_call.1} parent=27 // pred_check
          %p478 = pneg %p477
        $region34: #{tpu_custom_call.1} parent=27 // pred_check_branch
          %480 = sbr.rel (%p478) target = $region36
        $region35: #{tpu_custom_call.1} parent=27 // pred_region
          %s481 = scalar_lea.vmem [#allocation3], %s23
          %482 = vst [vmem:[%s481] sm:$0x1] -inf
        $region36: #{tpu_custom_call.1} parent=27 // pred_fallthru
          _
        %s483 = scalar_lea.vmem [#allocation3], %s23
        %v484 = vld [vmem:[%s483] sm:$0x1]
        %v485 = vmax.f32 %v484, %v406
        %486 = vst [vmem:[%s483] sm:$0x1] %v485
        %p487 = pnand %p477, %p407
        %p488 = pneg %p487
        // Predicated region
        $region37: #{tpu_custom_call.1} parent=27 // pred_check
          _
        $region38: #{tpu_custom_call.1} parent=27 // pred_check_branch
          %490 = sbr.rel (%p487) target = $region40
        $region39: #{tpu_custom_call.1} parent=27 // pred_region
          %491 = vst [vmem:[%s185] sm:$0x1] 0.0
        $region40: #{tpu_custom_call.1} parent=27 // pred_fallthru
          _
        %p492 = scmp.eq.s32.totalorder %s23, 1
        // Predicated region
        $region41: #{tpu_custom_call.1} parent=27 // pred_check
          %p493 = pneg %p492
        $region42: #{tpu_custom_call.1} parent=27 // pred_check_branch
          %495 = sbr.rel (%p493) target = $region44
        $region43: #{tpu_custom_call.1} parent=27 // pred_region
          %v496 = vld [vmem:[#allocation2] sm:$0xff]
          %v497 = vld [vmem:[#allocation2 + $0x8] sm:$0xff]
          %v498 = vld [vmem:[#allocation2 + $0x10] sm:$0xff]
          %v499 = vld [vmem:[#allocation2 + $0x18] sm:$0xff]
          %v500 = vld [vmem:[#allocation2 + $0x20] sm:$0xff]
          %v501 = vld [vmem:[#allocation2 + $0x28] sm:$0xff]
          %v502 = vld [vmem:[#allocation2 + $0x30] sm:$0xff]
          %v503 = vld [vmem:[#allocation2 + $0x38] sm:$0xff]
          %v504 = vld [vmem:[#allocation2 + $0x40] sm:$0xff]
          %v505 = vld [vmem:[#allocation2 + $0x48] sm:$0xff]
          %v506 = vld [vmem:[#allocation2 + $0x50] sm:$0xff]
          %v507 = vld [vmem:[#allocation2 + $0x58] sm:$0xff]
          %v508 = vld [vmem:[#allocation2 + $0x60] sm:$0xff]
          %v509 = vld [vmem:[#allocation2 + $0x68] sm:$0xff]
          %v510 = vld [vmem:[#allocation2 + $0x70] sm:$0xff]
          %v511 = vld [vmem:[#allocation2 + $0x78] sm:$0xff]
          %v512 = vmul.f32 %v496, -2.0
          %v513 = vmul.f32 %v497, -2.0
          %v514 = vmul.f32 %v498, -2.0
          %v515 = vmul.f32 %v499, -2.0
          %v516 = vmul.f32 %v500, -2.0
          %v517 = vmul.f32 %v501, -2.0
          %v518 = vmul.f32 %v502, -2.0
          %v519 = vmul.f32 %v503, -2.0
          %v520 = vmul.f32 %v504, -2.0
          %v521 = vmul.f32 %v505, -2.0
          %v522 = vmul.f32 %v506, -2.0
          %v523 = vmul.f32 %v507, -2.0
          %v524 = vmul.f32 %v508, -2.0
          %v525 = vmul.f32 %v509, -2.0
          %v526 = vmul.f32 %v510, -2.0
          %v527 = vmul.f32 %v511, -2.0
          %v528 = vmax.f32 %v512, 0.0
          %v529 = vmax.f32 %v513, 0.0
          %v530 = vmax.f32 %v514, 0.0
          %v531 = vmax.f32 %v515, 0.0
          %v532 = vmax.f32 %v516, 0.0
          %v533 = vmax.f32 %v517, 0.0
          %v534 = vmax.f32 %v518, 0.0
          %v535 = vmax.f32 %v519, 0.0
          %v536 = vmax.f32 %v520, 0.0
          %v537 = vmax.f32 %v521, 0.0
          %v538 = vmax.f32 %v522, 0.0
          %v539 = vmax.f32 %v523, 0.0
          %v540 = vmax.f32 %v524, 0.0
          %v541 = vmax.f32 %v525, 0.0
          %v542 = vmax.f32 %v526, 0.0
          %v543 = vmax.f32 %v527, 0.0
          %s544 = smul.u32 %s22, 128
          %v545 = vlaneseq
          %v546 = vshrl.u32 %v545, 7
          %v547 = vadd.s32 %v546, 8
          %v548 = vadd.s32 %v546, 16
          %v549 = vadd.s32 %v546, 24
          %v550 = vadd.s32 %v546, 32
          %v551 = vadd.s32 %v546, 40
          %v552 = vadd.s32 %v546, 48
          %v553 = vadd.s32 %v546, 56
          %v554 = vadd.s32 %v546, 64
          %v555 = vadd.s32 %v546, 72
          %v556 = vadd.s32 %v546, 80
          %v557 = vadd.s32 %v546, 88
          %v558 = vadd.s32 %v546, 96
          %v559 = vadd.s32 %v546, 104
          %v560 = vadd.s32 %v546, 112
          %v561 = vadd.s32 %v546, 120
          %v562 = vstv %s544
          %v563 = vadd.s32 %v562, %v546
          %v564 = vadd.s32 %v562, %v547
          %v565 = vadd.s32 %v562, %v548
          %v566 = vadd.s32 %v562, %v549
          %v567 = vadd.s32 %v562, %v550
          %v568 = vadd.s32 %v562, %v551
          %v569 = vadd.s32 %v562, %v552
          %v570 = vadd.s32 %v562, %v553
          %v571 = vadd.s32 %v562, %v554
          %v572 = vadd.s32 %v562, %v555
          %v573 = vadd.s32 %v562, %v556
          %v574 = vadd.s32 %v562, %v557
          %v575 = vadd.s32 %v562, %v558
          %v576 = vadd.s32 %v562, %v559
          %v577 = vadd.s32 %v562, %v560
          %v578 = vadd.s32 %v562, %v561
          %vm579 = vcmp.lt.s32.totalorder %v563, 200
          %vm580 = vcmp.lt.s32.totalorder %v564, 200
          %vm581 = vcmp.lt.s32.totalorder %v565, 200
          %vm582 = vcmp.lt.s32.totalorder %v566, 200
          %vm583 = vcmp.lt.s32.totalorder %v567, 200
          %vm584 = vcmp.lt.s32.totalorder %v568, 200
          %vm585 = vcmp.lt.s32.totalorder %v569, 200
          %vm586 = vcmp.lt.s32.totalorder %v570, 200
          %vm587 = vcmp.lt.s32.totalorder %v571, 200
          %vm588 = vcmp.lt.s32.totalorder %v572, 200
          %vm589 = vcmp.lt.s32.totalorder %v573, 200
          %vm590 = vcmp.lt.s32.totalorder %v574, 200
          %vm591 = vcmp.lt.s32.totalorder %v575, 200
          %vm592 = vcmp.lt.s32.totalorder %v576, 200
          %vm593 = vcmp.lt.s32.totalorder %v577, 200
          %vm594 = vcmp.lt.s32.totalorder %v578, 200
          %v595 = vsel %vm579, %v528, 0.0
          %v596 = vsel %vm580, %v529, 0.0
          %v597 = vsel %vm581, %v530, 0.0
          %v598 = vsel %vm582, %v531, 0.0
          %v599 = vsel %vm583, %v532, 0.0
          %v600 = vsel %vm584, %v533, 0.0
          %v601 = vsel %vm585, %v534, 0.0
          %v602 = vsel %vm586, %v535, 0.0
          %v603 = vsel %vm587, %v536, 0.0
          %v604 = vsel %vm588, %v537, 0.0
          %v605 = vsel %vm589, %v538, 0.0
          %v606 = vsel %vm590, %v539, 0.0
          %v607 = vsel %vm591, %v540, 0.0
          %v608 = vsel %vm592, %v541, 0.0
          %v609 = vsel %vm593, %v542, 0.0
          %v610 = vsel %vm594, %v543, 0.0
          %v611 = vld [vmem:[%s185] sm:$0x1]
          %v612 = vsel %vm460, %v595, 0.0
          %v613 = vsel %vm460, %v596, 0.0
          %v614 = vadd.f32 %v612, %v613
          %v615 = vsel %vm460, %v597, 0.0
          %v616 = vadd.f32 %v614, %v615
          %v617 = vsel %vm460, %v598, 0.0
          %v618 = vadd.f32 %v616, %v617
          %v619 = vsel %vm460, %v599, 0.0
          %v620 = vadd.f32 %v618, %v619
          %v621 = vsel %vm460, %v600, 0.0
          %v622 = vadd.f32 %v620, %v621
          %v623 = vsel %vm460, %v601, 0.0
          %v624 = vadd.f32 %v622, %v623
          %v625 = vsel %vm460, %v602, 0.0
          %v626 = vadd.f32 %v624, %v625
          %v627 = vsel %vm460, %v603, 0.0
          %v628 = vadd.f32 %v626, %v627
          %v629 = vsel %vm460, %v604, 0.0
          %v630 = vadd.f32 %v628, %v629
          %v631 = vsel %vm460, %v605, 0.0
          %v632 = vadd.f32 %v630, %v631
          %v633 = vsel %vm460, %v606, 0.0
          %v634 = vadd.f32 %v632, %v633
          %v635 = vsel %vm460, %v607, 0.0
          %v636 = vadd.f32 %v634, %v635
          %v637 = vsel %vm460, %v608, 0.0
          %v638 = vadd.f32 %v636, %v637
          %v639 = vsel %vm460, %v609, 0.0
          %v640 = vadd.f32 %v638, %v639
          %v641 = vsel %vm460, %v610, 0.0
          %v642 = vadd.f32 %v640, %v641
          %643 = vadd.xlane.f32.xlu0 %v642
          %v644 = vpop.xlane.xlu0 %643
          %v645 = vrot.slane %v644, 4
          %v646 = vadd.f32 %v644, %v645
          %v647 = vrot.slane %v646, 2
          %v648 = vadd.f32 %v646, %v647
          %v649 = vrot.slane %v648, 1
          %v650 = vadd.f32 %v648, %v649
          %s651 = vtos %v650
          %v652 = vrcp.pop 200.0
          %v653 = vmul.f32 200.0, %v652
          %v654 = vsub.f32 1.0, %v653
          %v655 = vmul.f32 %v652, %v654
          %v656 = vadd.f32 %v652, %v655
          %vm657 = vweird.f32 %v652
          %v658 = vsel %vm657, %v652, %v656
          %s659 = vtos %v658
          %s660 = smul.f32 %s651, %s659
          %v661 = vstv %s660
          %v662 = vadd.f32 %v611, %v661
          %663 = vst [vmem:[%s185] sm:$0x1] %v662
        $region44: #{tpu_custom_call.1} parent=27 // pred_fallthru
          _
        %p664 = scmp.eq.s32.totalorder %s22, 1
        // Predicated region
        $region45: #{tpu_custom_call.1} parent=27 // pred_check
          %p665 = pneg %p664
        $region46: #{tpu_custom_call.1} parent=27 // pred_check_branch
          %667 = sbr.rel (%p665) target = $region48
        $region47: #{tpu_custom_call.1} parent=27 // pred_region
          %v668 = vld [vmem:[%s483] sm:$0x1]
          %v669 = vmul.f32 %v668, -2.0
          %v670 = vmax.f32 %v669, 0.0
          %s671 = smul.u32 %s23, 128
          %v672 = vlaneseq
          %v673 = vand.u32 %v672, 127
          %v674 = vstv %s671
          %v675 = vadd.s32 %v674, %v673
          %vm676 = vcmp.lt.s32.totalorder %v675, 176
          %v677 = vsel %vm676, %v670, 0.0
          %v678 = vld [vmem:[%s185] sm:$0x1]
          %vm679 = vcmask 1040384
          %v680 = vsel %vm679, %v677, 0.0
          %681 = vadd.xlane.f32.xlu0 %v680
          %v682 = vpop.xlane.xlu0 %681
          %v683 = vrot.slane %v682, 4
          %v684 = vadd.f32 %v682, %v683
          %v685 = vrot.slane %v684, 2
          %v686 = vadd.f32 %v684, %v685
          %v687 = vrot.slane %v686, 1
          %v688 = vadd.f32 %v686, %v687
          %s689 = vtos %v688
          %v690 = vrcp.pop 176.0
          %v691 = vmul.f32 176.0, %v690
          %v692 = vsub.f32 1.0, %v691
          %v693 = vmul.f32 %v690, %v692
          %v694 = vadd.f32 %v690, %v693
          %vm695 = vweird.f32 %v690
          %v696 = vsel %vm695, %v690, %v694
          %s697 = vtos %v696
          %s698 = smul.f32 %s689, %s697
          %v699 = vstv %s698
          %v700 = vadd.f32 %v678, %v699
          %701 = vst [vmem:[%s185] sm:$0x1] %v700
        $region48: #{tpu_custom_call.1} parent=27 // pred_fallthru
          _
        %s702 = sand.u32 %s99, 1
        %s703 = scalar_lea.sflag [#allocation5], %s702
        %s704 = sand.u32 %s99, 1
        %s705 = scalar_lea.vmem [#allocation4], %s704
        // Predicated region
        $region49: #{tpu_custom_call.1} parent=27 // pred_check
          %p706 = pneg %p109
        $region50: #{tpu_custom_call.1} parent=27 // pred_check_branch
          %708 = sbr.rel (%p706) target = $region52
        $region51: #{tpu_custom_call.1} parent=27 // pred_region
          %710 = vsyncadd %s703, 0
          %s711 = scalar_lea.hbm %s2, %s21
          %s713 = sshll.u32 %s705, 4
          %s714 = int_to_ptr.vmem [resolvable:$true] %s713
          %s715 = sshll.u32 %s711, 4
          %s716 = int_to_ptr.hbm [resolvable:$true] %s715
          %718 = dma.vmem_to_hbm [thread:$0]  %s714, 16, %s716, %s703
        $region52: #{tpu_custom_call.1} parent=27 // pred_fallthru
          _
      $region28: #{tpu_custom_call.1} parent=5 // pred_fallthru
        _
      %p719 = scmp.le.s32.totalorder 2, %s11
      // Predicated region
      $region53: #{tpu_custom_call.1} parent=5 // pred_check
        %p720 = pneg %p719
      $region54: #{tpu_custom_call.1} parent=5 // pred_check_branch
        %722 = sbr.rel (%p720) target = $region56
      $region55: #{tpu_custom_call.1} parent=5 // pred_region
        %s723 = ssub.s32 %s11, 2
        // Predicated region
        $region57: #{tpu_custom_call.1} parent=55 // pred_check
          %p724 = pneg %p115
        $region58: #{tpu_custom_call.1} parent=55 // pred_check_branch
          %726 = sbr.rel (%p724) target = $region60
        $region59: #{tpu_custom_call.1} parent=55 // pred_region
          %s727 = sand.u32 %s100, 1
          %s728 = scalar_lea.sflag [#allocation5], %s727
          %s729 = sand.u32 %s100, 1
          %s730 = scalar_lea.vmem [#allocation4], %s729
          %732 = dma.done %s728, 16
        $region60: #{tpu_custom_call.1} parent=55 // pred_fallthru
          _
      $region56: #{tpu_custom_call.1} parent=5 // pred_fallthru
        _
    $region6: #{tpu_custom_call.1} parent=1 // loop_footer
      %s15 = sadd.s32 1, %s11
    $region7: #{tpu_custom_call.1} parent=1 // loop_footer_branch
      %10 = sbr.rel target = $region3
    $region8: #{tpu_custom_call.1} parent=1 // loop_exit
      _
    %733 = vsyncpa [#allocation5], 1
    %s734 = scalar_lea.sflag [#allocation5], 1
    %735 = vsyncpa %s734, 1

</llo_original>
